<compile_context>
chip_gen: v7x
topology: tpu7x:2x2x1
jax: 0.10.0
libtpu: 0.0.40
codegen_flags: <defaults>
</compile_context>

<pallas_src>
import functools

import jax
import jax.numpy as jnp
from jax.experimental import pallas as pl
from jax.experimental.pallas import tpu as pltpu

COEF = 0.97


def _preemphasis_kernel(x_ref, o_ref, carry_ref, *, coef):
    t = pl.program_id(1)  # time-tile index (last / sequential grid axis)

    x = x_ref[...].astype(jnp.float32)

    # First time tile of this batch block: seed the carry with the reflect
    # value x[:, 1], so y[:, 0] = x[:, 0] - coef * x[:, 1].
    @pl.when(t == 0)
    def _():
        carry_ref[...] = x[:, 1:2]

    prev_col0 = carry_ref[...]              # correct x[t-1] for lane 0
    prev = pltpu.roll(x, shift=1, axis=1)   # wrong only at lane 0 (wrap-around)

    # Save this tile's last sample for the next time tile.
    carry_ref[...] = x[:, -1:]

    y = x - coef * prev
    o_ref[...] = y.astype(o_ref.dtype)
    # Patch lane 0 with the carried / reflect previous sample.
    o_ref[:, 0:1] = (x[:, 0:1] - coef * prev_col0).astype(o_ref.dtype)


def _round_up(n: int, m: int) -> int:
    return ((n + m - 1) // m) * m


def preemphasis(x: jax.Array, coef: float = COEF,
                tile_t: int | None = None, tile_b: int | None = None) -> jax.Array:
    assert x.ndim == 2, "The number of dimensions of input tensor must be 2!"
    B, T = x.shape
    assert T >= 2, "reflect padding of 1 requires at least 2 samples"

    # Sublane multiple depends on dtype packing (8 for 4B, 16 for 2B, 32 for 1B).
    sub = 8 * (4 // max(1, jnp.dtype(x.dtype).itemsize))

    if tile_t is None:
        # Lane-dense tiles, capped so double-buffered in+out stays well under
        # the default scoped VMEM on every generation (incl. v7x's 64 MiB).
        tile_t = min(_round_up(T, 128), 32768)
    assert tile_t % 128 == 0
    if tile_b is None:
        tile_b = min(_round_up(B, sub), 128)
    assert tile_b % sub == 0

    Bp = _round_up(B, tile_b)
    Tp = _round_up(T, tile_t)
    xp = x
    if (Bp, Tp) != (B, T):
        # Padding only adds trailing rows/samples; the filter dependency is
        # strictly backward in time so valid outputs are unaffected.
        xp = jnp.pad(x, ((0, Bp - B), (0, Tp - T)))

    grid = (Bp // tile_b, Tp // tile_t)

    out = pl.pallas_call(
        functools.partial(_preemphasis_kernel, coef=float(coef)),
        out_shape=jax.ShapeDtypeStruct((Bp, Tp), x.dtype),
        grid_spec=pltpu.PrefetchScalarGridSpec(
            num_scalar_prefetch=0,
            grid=grid,
            in_specs=[pl.BlockSpec((tile_b, tile_t), lambda b, t: (b, t))],
            out_specs=pl.BlockSpec((tile_b, tile_t), lambda b, t: (b, t)),
            scratch_shapes=[pltpu.VMEM((tile_b, 1), jnp.float32)],
        ),
        compiler_params=pltpu.CompilerParams(
            dimension_semantics=("parallel", "arbitrary"),
        ),
    )(xp)

    if (Bp, Tp) != (B, T):
        out = out[:B, :T]
    return out


def preemphasis_ref(x: jax.Array, coef: float = COEF) -> jax.Array:
    # Pure-JAX reference: reflect-pad left by 1, then FIR [-coef, 1.0].
    padded = jnp.concatenate([x[:, 1:2], x], axis=1)
    return padded[:, 1:] - coef * padded[:, :-1]


if __name__ == "__main__":
    key = jax.random.PRNGKey(0)

    # Test 1: nicely shaped input, forced small time tile to exercise the
    # cross-tile carry (2 time tiles).
    B, T = 8, 256
    x = jax.random.normal(key, (B, T), dtype=jnp.float32)
    y = jax.block_until_ready(preemphasis(x, tile_t=128))
    y_ref = preemphasis_ref(x)
    assert y.shape == (B, T) and y.dtype == jnp.float32
    assert jnp.allclose(y, y_ref, atol=1e-6, rtol=1e-6)

    # Test 2: ragged shape (B not multiple of 8, T not multiple of 128) to
    # exercise the wrapper padding + slicing path, with multiple time tiles.
    B2, T2 = 3, 300
    x2 = jax.random.normal(jax.random.PRNGKey(1), (B2, T2), dtype=jnp.float32)
    y2 = jax.block_until_ready(preemphasis(x2, tile_t=128))
    y2_ref = preemphasis_ref(x2)
    assert y2.shape == (B2, T2)
    assert jnp.allclose(y2, y2_ref, atol=1e-6, rtol=1e-6)

    print("KERNEL_OK")
</pallas_src>

<mosaic_0001>
module attributes {stable_mosaic.version = 11 : i64} {
  func.func @_preemphasis_kernel(%arg0: i32, %arg1: i32, %arg2: memref<8x128xf32, #tpu.memory_space<vmem>>, %arg3: memref<8x128xf32, #tpu.memory_space<vmem>>, %arg4: memref<8x1xf32, #tpu.memory_space<vmem>>) attributes {dimension_semantics = [#tpu.dimension_semantics<parallel>, #tpu.dimension_semantics<arbitrary>], iteration_bounds = array<i64: 1, 2>, scalar_prefetch = 0 : i64, scratch_operands = 1 : i64, tpu.core_type = #tpu.core_type<tc>, window_params = [{transform_indices = @transform_0, window_bounds = array<i64: 8, 128>}, {transform_indices = @transform_1, window_bounds = array<i64: 8, 128>}]} {
    %c0 = arith.constant 0 : index
    %c0_0 = arith.constant 0 : index
    %0 = vector.load %arg2[%c0, %c0_0] : memref<8x128xf32, #tpu.memory_space<vmem>>, vector<8x128xf32>
    %c0_i32 = arith.constant 0 : i32
    %1 = arith.cmpi eq, %arg1, %c0_i32 : i32
    %2 = arith.extui %1 : i1 to i32
    %c0_i32_1 = arith.constant 0 : i32
    %3 = arith.cmpi ne, %2, %c0_i32_1 : i32
    scf.if %3 {
      %17 = vector.extract_strided_slice %0 {offsets = [0, 1], sizes = [8, 1], strides = [1, 1]} : vector<8x128xf32> to vector<8x1xf32>
      %c0_11 = arith.constant 0 : index
      %c0_12 = arith.constant 0 : index
      %18 = vector.load %arg4[%c0_11, %c0_12] : memref<8x1xf32, #tpu.memory_space<vmem>>, vector<8x1xf32>
      tpu.vector_store %arg4[%c0_11, %c0_12], %17 {strides = array<i32>} : memref<8x1xf32, #tpu.memory_space<vmem>>, vector<8x1xf32>,
    } else {
    }
    %c0_2 = arith.constant 0 : index
    %c0_3 = arith.constant 0 : index
    %4 = vector.load %arg4[%c0_2, %c0_3] : memref<8x1xf32, #tpu.memory_space<vmem>>, vector<8x1xf32>
    %c1_i32 = arith.constant 1 : i32
    %5 = tpu.dynamic_rotate %0 by %c1_i32 dim 1 : vector<8x128xf32>, i32 -> vector<8x128xf32>
    %6 = vector.extract_strided_slice %0 {offsets = [0, 127], sizes = [8, 1], strides = [1, 1]} : vector<8x128xf32> to vector<8x1xf32>
    %c0_4 = arith.constant 0 : index
    %c0_5 = arith.constant 0 : index
    %7 = vector.load %arg4[%c0_4, %c0_5] : memref<8x1xf32, #tpu.memory_space<vmem>>, vector<8x1xf32>
    tpu.vector_store %arg4[%c0_4, %c0_5], %6 {strides = array<i32>} : memref<8x1xf32, #tpu.memory_space<vmem>>, vector<8x1xf32>,
    %cst = arith.constant 9.700000e-01 : f32
    %8 = vector.broadcast %cst : f32 to vector<8x128xf32>
    %9 = arith.mulf %8, %5 : vector<8x128xf32>
    %10 = arith.subf %0, %9 : vector<8x128xf32>
    %c0_6 = arith.constant 0 : index
    %c0_7 = arith.constant 0 : index
    %11 = vector.load %arg3[%c0_6, %c0_7] : memref<8x128xf32, #tpu.memory_space<vmem>>, vector<8x128xf32>
    tpu.vector_store %arg3[%c0_6, %c0_7], %10 {strides = array<i32>} : memref<8x128xf32, #tpu.memory_space<vmem>>, vector<8x128xf32>,
    %12 = vector.extract_strided_slice %0 {offsets = [0, 0], sizes = [8, 1], strides = [1, 1]} : vector<8x128xf32> to vector<8x1xf32>
    %cst_8 = arith.constant 9.700000e-01 : f32
    %13 = vector.broadcast %cst_8 : f32 to vector<8x1xf32>
    %14 = arith.mulf %13, %4 : vector<8x1xf32>
    %15 = arith.subf %12, %14 : vector<8x1xf32>
    %c0_9 = arith.constant 0 : index
    %c0_10 = arith.constant 0 : index
    %16 = vector.load %arg3[%c0_9, %c0_10] : memref<8x128xf32, #tpu.memory_space<vmem>>, vector<8x1xf32>
    tpu.vector_store %arg3[%c0_9, %c0_10], %15 {strides = array<i32>} : memref<8x128xf32, #tpu.memory_space<vmem>>, vector<8x1xf32>,
    return
  }
  func.func @transform_0(%arg0: i32, %arg1: i32) -> (i32, i32) {
    %c0_i32 = arith.constant 0 : i32
    return %arg0, %arg1 : i32, i32
  }
  func.func @transform_1(%arg0: i32, %arg1: i32) -> (i32, i32) {
    %c0_i32 = arith.constant 0 : i32
    return %arg0, %arg1 : i32, i32
  }
}

</mosaic_0001>

<llo_original>
// kernel: tpu_custom_call.1
$region0: #{tpu_custom_call.1}
  #allocation0 [shape = 'u32[]', space=smem, size = 0x4, offset = 0x4, fixed_abs, tag = 'smem constant byte address 0x4 - core index']
  #allocation1 [shape = 'u32[144,128]{1,0:T(1,128)}', space=vmem, size = 0x12000, scoped, tag = 'internal scratch']
  #allocation2 [shape = 'f32[8,1]{1,0:T(8,128)}', space=vmem, size = 0x1000, scoped, tag = 'scratch operand']
  %s0 = inlined_call_operand.hbm [shape: f32[8,256], index: 0, kind: input, shape index: {}]
  %s1 = inlined_call_operand.hbm [shape: f32[8,256], index: 1, kind: output, shape index: {}]
  %s2 = sld [smem:[#allocation0]]
  $region45: #{tpu_custom_call.1} parent=0
    _
  %s4 = ssub.s32 1, %s2
  %s5 = scalar_select 0, %s4, %s2
  $region1: #{tpu_custom_call.1} parent=0
    #allocation3 [shape = 'u8[8192]{0}', space=vmem, size = 0x2000, scoped, tag = 'input window, operand 0']
    #allocation4 [shape = 's32[2]{0}', space=sflag, size = 0x8, scoped, tag = 'scoped memory for tpu_custom_call.1']
    #allocation5 [shape = 's32[2]{0}', space=sflag, size = 0x8, scoped, tag = 'scoped memory for tpu_custom_call.1']
    #allocation6 [shape = 'u8[8192]{0}', space=vmem, size = 0x2000, scoped, tag = 'output window, operand 0']
    %6 = vsyncpa [#allocation4], 0
    %s7 = scalar_lea.sflag [#allocation4], 1
    %8 = vsyncpa %s7, 0
    %9 = vsyncpa [#allocation5], 0
    %s10 = scalar_lea.sflag [#allocation5], 1
    %11 = vsyncpa %s10, 0
    loop: start=0, step=1, limit=4
    $region2: #{tpu_custom_call.1} parent=1 // loop_pre_header
      _
    $region3: #{tpu_custom_call.1} parent=1 // loop_header
      %s13 = sphi 0, %s17
      %p14 = scmp.ge.s32.totalorder %s13, 4
      %s20 = sphi 0, %s32
      %s21 = sphi 0, %s28
      %s22 = sphi 0, %s20
      %s23 = sphi 0, %s21
      %s24 = sphi 0, %s22
      %s25 = sphi 0, %s23
      %s37 = sphi 0, %s39
      %s40 = sphi 0, %s37
      %s41 = sphi 0, %s40
      %s57 = sphi 0, %s41
      %s65 = sphi 0, %s67
      %s68 = sphi 0, %s65
      %s69 = sphi 0, %s68
      %s85 = sphi 0, %s69
    $region4: #{tpu_custom_call.1} parent=1 // loop_header_branch
      %16 = sbr.rel (%p14) target = $region8
    $region5: #{tpu_custom_call.1} parent=1 // loop_body
      %s18 = ssub.s32 %s13, 1
      %s19 = ssub.s32 %s13, 2
      %s26 = sadd.s32 1, %s21
      %p27 = scmp.ge.s32.totalorder %s26, 2
      %s28 = scalar_select %p27, 0, %s26
      %s29 = sadd.s32 1, %s20
      %s30 = scalar_select %p27, %s29, %s20
      %p31 = scmp.ge.s32.totalorder %s30, 1
      %s32 = scalar_select %p31, 0, %s30
      %s33 = ssub.s32 %s20, %s32
      %s34 = ssub.s32 %s21, %s28
      %s35 = sor.u32 %s33, %s34
      %p36 = scmp.eq.s32.totalorder %s35, 0
      %s38 = sadd.s32 %s37, 1
      %s39 = scalar_select %p36, %s37, %s38
      %p42 = pneg %p36
      %p43 = scmp.eq.s32.totalorder %s13, 1
      %p44 = por %p42, %p43
      %p45 = scmp.ne.s32.totalorder %s37, %s40
      %p46 = scmp.eq.s32.totalorder %s13, 0
      %p47 = por %p45, %p46
      %p48 = scmp.ne.s32.totalorder %s37, %s40
      %p49 = scmp.eq.s32.totalorder %s18, 1
      %p50 = por %p48, %p49
      %p51 = scmp.ne.s32.totalorder %s40, %s41
      %p52 = scmp.eq.s32.totalorder %s18, 0
      %p53 = por %p51, %p52
      %p54 = scmp.ne.s32.totalorder %s40, %s41
      %p55 = scmp.eq.s32.totalorder %s19, 1
      %p56 = por %p54, %p55
      %p58 = scmp.ne.s32.totalorder %s41, %s57
      %p59 = scmp.eq.s32.totalorder %s19, 0
      %p60 = por %p58, %p59
      %s61 = ssub.s32 %s20, %s32
      %s62 = ssub.s32 %s21, %s28
      %s63 = sor.u32 %s61, %s62
      %p64 = scmp.eq.s32.totalorder %s63, 0
      %s66 = sadd.s32 %s65, 1
      %s67 = scalar_select %p64, %s65, %s66
      %p70 = pneg %p64
      %p71 = scmp.eq.s32.totalorder %s13, 1
      %p72 = por %p70, %p71
      %p73 = scmp.ne.s32.totalorder %s65, %s68
      %p74 = scmp.eq.s32.totalorder %s13, 0
      %p75 = por %p73, %p74
      %p76 = scmp.ne.s32.totalorder %s65, %s68
      %p77 = scmp.eq.s32.totalorder %s18, 1
      %p78 = por %p76, %p77
      %p79 = scmp.ne.s32.totalorder %s68, %s69
      %p80 = scmp.eq.s32.totalorder %s18, 0
      %p81 = por %p79, %p80
      %p82 = scmp.ne.s32.totalorder %s68, %s69
      %p83 = scmp.eq.s32.totalorder %s19, 1
      %p84 = por %p82, %p83
      %p86 = scmp.ne.s32.totalorder %s69, %s85
      %p87 = scmp.eq.s32.totalorder %s19, 0
      %p88 = por %p86, %p87
      %p89 = scmp.le.s32.totalorder 1, %s13
      %p90 = scmp.lt.s32.totalorder %s13, 3
      %p91 = pnand %p89, %p90
      %p92 = pneg %p91
      // Predicated region
      $region9: #{tpu_custom_call.1} parent=5 // pred_check
        _
      $region10: #{tpu_custom_call.1} parent=5 // pred_check_branch
        %94 = sbr.rel (%p91) target = $region12
      $region11: #{tpu_custom_call.1} parent=5 // pred_region
        %s95 = ssub.s32 %s13, 1
      $region12: #{tpu_custom_call.1} parent=5 // pred_fallthru
        _
      %p96 = scmp.lt.s32.totalorder %s13, 2
      // Predicated region
      $region13: #{tpu_custom_call.1} parent=5 // pred_check
        %p97 = pneg %p96
      $region14: #{tpu_custom_call.1} parent=5 // pred_check_branch
        %99 = sbr.rel (%p97) target = $region16
      $region15: #{tpu_custom_call.1} parent=5 // pred_region
        // Predicated region
        $region17: #{tpu_custom_call.1} parent=15 // pred_check
          %p100 = pneg %p47
        $region18: #{tpu_custom_call.1} parent=15 // pred_check_branch
          %102 = sbr.rel (%p100) target = $region20
        $region19: #{tpu_custom_call.1} parent=15 // pred_region
          %s103 = sand.u32 %s37, 1
          %s104 = scalar_lea.sflag [#allocation4], %s103
          %s105 = sand.u32 %s37, 1
          %s106 = smul.addr %s105, 8
          %s107 = scalar_lea.vmem [#allocation3], %s106
          %s109 = ssub.s32 128, 128
          %110 = vsyncadd %s104, %s109
          %s111 = smul.addr %s20, 2
          %s112 = sadd.s32 %s21, %s111
          %s113 = smul.addr %s112, 128
          %s114 = scalar_lea.hbm %s0, %s113
          %s116 = sshll.u32 %s107, 4
          %s117 = int_to_ptr.vmem [resolvable:$true] %s116
          %119 = dma.hbm_to_vmem [thread:$0]  %s114, 128, %s117, %s104
        $region20: #{tpu_custom_call.1} parent=15 // pred_fallthru
          _
      $region16: #{tpu_custom_call.1} parent=5 // pred_fallthru
        _
      %p120 = scmp.le.s32.totalorder 1, %s13
      %p121 = scmp.lt.s32.totalorder %s13, 3
      %p122 = pnand %p120, %p121
      %p123 = pneg %p122
      // Predicated region
      $region21: #{tpu_custom_call.1} parent=5 // pred_check
        _
      $region22: #{tpu_custom_call.1} parent=5 // pred_check_branch
        %125 = sbr.rel (%p122) target = $region24
      $region23: #{tpu_custom_call.1} parent=5 // pred_region
        %s126 = ssub.s32 %s13, 1
        %s127 = sand.u32 %s40, 1
        %s128 = scalar_lea.sflag [#allocation4], %s127
        %s129 = sand.u32 %s40, 1
        %s130 = smul.addr %s129, 8
        %s131 = scalar_lea.vmem [#allocation3], %s130
        // Predicated region
        $region25: #{tpu_custom_call.1} parent=23 // pred_check
          %p132 = pneg %p53
        $region26: #{tpu_custom_call.1} parent=23 // pred_check_branch
          %134 = sbr.rel (%p132) target = $region28
        $region27: #{tpu_custom_call.1} parent=23 // pred_region
          %135 = dma.done %s128, 128
        $region28: #{tpu_custom_call.1} parent=23 // pred_fallthru
          _
        %s136 = sand.u32 %s40, 1
        %s137 = scalar_lea.sflag [#allocation4], %s136
        %s138 = sand.u32 %s40, 1
        %s139 = smul.addr %s138, 8
        %s140 = scalar_lea.vmem [#allocation3], %s139
        %p141 = pneg %p53
        %p142 = pneg %p50
        %p143 = pneg %p81
        %p144 = pneg %p78
        %s145 = sand.u32 %s68, 1
        %s146 = scalar_lea.sflag [#allocation5], %s145
        %s147 = sand.u32 %s68, 1
        %s148 = smul.addr %s147, 8
        %s149 = scalar_lea.vmem [#allocation6], %s148
        %v150 = vld [vmem:[%s131] sm:$0xff]
        %p151 = scmp.eq.s32.totalorder %s23, 0
        // Predicated region
        $region29: #{tpu_custom_call.1} parent=23 // pred_check
          %p152 = pneg %p151
        $region30: #{tpu_custom_call.1} parent=23 // pred_check_branch
          %154 = sbr.rel (%p152) target = $region32
        $region31: #{tpu_custom_call.1} parent=23 // pred_region
          %156 = vrot.lane.b32.xlu0 %v150, 127
          %v157 = vpop.permute.xlu0 %156
          %vm159 = vcmask 7168
          %160 = vst.msk [vmem:[#allocation2] sm:$0xff] %vm159, %v157
        $region32: #{tpu_custom_call.1} parent=23 // pred_fallthru
          _
        %v161 = vld [vmem:[#allocation2] sm:$0xff]
        %162 = vrot.lane.b32.xlu0 %v150, 1
        %v163 = vpop.permute.xlu0 %162
        %165 = vrot.lane.b32.xlu0 %v150, 1
        %v166 = vpop.permute.xlu0 %165
        %vm168 = vcmask 7168
        %169 = vst.msk [vmem:[#allocation2] sm:$0xff] %vm168, %v166
        %v170 = vmul.f32 %v163, 0.97
        %v171 = vsub.f32 %v150, %v170
        %172 = vst [vmem:[%s149] sm:$0xff] %v171
        %v173 = vmul.f32 %v161, 0.97
        %v174 = vsub.f32 %v150, %v173
        %175 = vst.msk [vmem:[%s149] sm:$0xff] %vm168, %v174
        %s176 = sand.u32 %s68, 1
        %s177 = scalar_lea.sflag [#allocation5], %s176
        %s178 = sand.u32 %s68, 1
        %s179 = smul.addr %s178, 8
        %s180 = scalar_lea.vmem [#allocation6], %s179
        // Predicated region
        $region33: #{tpu_custom_call.1} parent=23 // pred_check
          %p181 = pneg %p78
        $region34: #{tpu_custom_call.1} parent=23 // pred_check_branch
          %183 = sbr.rel (%p181) target = $region36
        $region35: #{tpu_custom_call.1} parent=23 // pred_region
          %s185 = ssub.s32 128, 128
          %186 = vsyncadd %s177, %s185
          %s187 = smul.addr %s22, 2
          %s188 = sadd.s32 %s23, %s187
          %s189 = smul.addr %s188, 128
          %s190 = scalar_lea.hbm %s1, %s189
          %s192 = sshll.u32 %s180, 4
          %s193 = int_to_ptr.vmem [resolvable:$true] %s192
          %195 = dma.vmem_to_hbm [thread:$0]  %s193, 128, %s190, %s177
        $region36: #{tpu_custom_call.1} parent=23 // pred_fallthru
          _
      $region24: #{tpu_custom_call.1} parent=5 // pred_fallthru
        _
      %p196 = scmp.le.s32.totalorder 2, %s13
      // Predicated region
      $region37: #{tpu_custom_call.1} parent=5 // pred_check
        %p197 = pneg %p196
      $region38: #{tpu_custom_call.1} parent=5 // pred_check_branch
        %199 = sbr.rel (%p197) target = $region40
      $region39: #{tpu_custom_call.1} parent=5 // pred_region
        %s200 = ssub.s32 %s13, 2
        // Predicated region
        $region41: #{tpu_custom_call.1} parent=39 // pred_check
          %p201 = pneg %p84
        $region42: #{tpu_custom_call.1} parent=39 // pred_check_branch
          %203 = sbr.rel (%p201) target = $region44
        $region43: #{tpu_custom_call.1} parent=39 // pred_region
          %s204 = sand.u32 %s69, 1
          %s205 = scalar_lea.sflag [#allocation5], %s204
          %s206 = sand.u32 %s69, 1
          %s207 = smul.addr %s206, 8
          %s208 = scalar_lea.vmem [#allocation6], %s207
          %209 = dma.done %s205, 128
        $region44: #{tpu_custom_call.1} parent=39 // pred_fallthru
          _
      $region40: #{tpu_custom_call.1} parent=5 // pred_fallthru
        _
    $region6: #{tpu_custom_call.1} parent=1 // loop_footer
      %s17 = sadd.s32 1, %s13
    $region7: #{tpu_custom_call.1} parent=1 // loop_footer_branch
      %12 = sbr.rel target = $region3
    $region8: #{tpu_custom_call.1} parent=1 // loop_exit
      _
    %210 = vsyncpa [#allocation4], 1
    %s211 = scalar_lea.sflag [#allocation4], 1
    %212 = vsyncpa %s211, 1
    %213 = vsyncpa [#allocation5], 1
    %s214 = scalar_lea.sflag [#allocation5], 1
    %215 = vsyncpa %s214, 1

</llo_original>
